<compile_context>
chip_gen: v7x
topology: tpu7x:2x2x1
jax: 0.10.0
libtpu: 0.0.40
codegen_flags: <defaults>
</compile_context>

<pallas_src>
import jax
import jax.numpy as jnp
from jax import lax
from jax.experimental import pallas as pl
from jax.experimental.pallas import tpu as pltpu


def lstm_kernel(x_ref, w_ref, whh_ref, out_ref):
    """x_ref:   (seq_len, in_size)  f32 input sequence
       w_ref:   (in_size + 1 + out_size + 1, 4*Hp) f32 slab:
                  rows [0, in_size)        W_ih^T  gate order [i,f,o,g], i/f/o cols * 0.5
                  row  in_size             b_ih+b_hh, same packing/scaling
                  rows [in_size+1, +out)   W_out rows, cols [:H] real, rest 0
                  row  in_size+1+out_size  b_out in cols [:out_size]
       whh_ref: (Hp, 4*Hp) bf16  W_hh^T, same gate packing/scaling, rows >= H are 0
       out_ref: (1, Hp) f32, lanes [:out_size] hold the prediction."""
    seq_len, in_size = x_ref.shape
    Hp = whh_ref.shape[0]
    G = whh_ref.shape[1]                       # 4 * Hp
    out_size = w_ref.shape[0] - in_size - 2

    # ---------- prologue: input projection + bias (hoisted off the serial path) ----------
    bias = w_ref[in_size:in_size + 1, :]                        # (1, G)
    xg = jnp.broadcast_to(bias, (seq_len, G))
    x = x_ref[...]                                              # (seq_len, in_size)
    for k in range(in_size):                                    # in_size == 1 -> one bcast-mul
        xg = xg + x[:, k:k + 1] * w_ref[k:k + 1, :]
    # xg: (seq_len, G) f32, gate order [i, f, o, g], i/f/o pre-scaled by 0.5

    # ---------- recurrence: fully unrolled (seq_len is static), MXU bf16 x bf16 -> f32 ----
    whh = whh_ref[...]                                          # (Hp, G) bf16, loaded once
    h = jnp.zeros((1, Hp), jnp.float32)
    c = jnp.zeros((1, Hp), jnp.float32)
    for t in range(seq_len):
        if t == 0:
            gates = xg[0:1, :]                                  # h0 == 0: skip the matmul
        else:
            gates = jnp.dot(h.astype(jnp.bfloat16), whh,
                            preferred_element_type=jnp.float32) + xg[t:t + 1, :]
        tg = jnp.tanh(gates)                                    # one tanh covers all 4 gates
        i = 0.5 * tg[:, 0 * Hp:1 * Hp] + 0.5                    # sigmoid(z) = 0.5*tanh(z/2)+0.5
        f = 0.5 * tg[:, 1 * Hp:2 * Hp] + 0.5
        o = 0.5 * tg[:, 2 * Hp:3 * Hp] + 0.5
        g = tg[:, 3 * Hp:4 * Hp]
        c = f * c + i * g
        h = o * jnp.tanh(c)

    # ---------- epilogue: Linear(H -> out_size) on VPU + lane reduce (no MXU staging) -----
    lane = lax.broadcasted_iota(jnp.int32, (1, Hp), 1)
    acc = jnp.zeros((1, Hp), jnp.float32)
    for k in range(out_size):                                   # out_size == 1
        wrow = w_ref[in_size + 1 + k:in_size + 2 + k, 0:Hp]     # (1, Hp)
        val = jnp.sum(h * wrow, axis=1, keepdims=True)          # (1, 1)
        acc = jnp.where(lane == k, val, acc)
    bout = w_ref[in_size + 1 + out_size:in_size + 2 + out_size, 0:Hp]
    out_ref[...] = acc + bout                                   # lane-dense (1, Hp) store


def pack_params(w_ih, w_hh, b_ih, b_hh, w_out, b_out, Hp=128):
    """Host-side, one-time packing (hoisted out of the per-call path).
    PyTorch layouts: w_ih (4H, in), w_hh (4H, H), b_* (4H,), w_out (out, H), b_out (out,)."""
    H = w_hh.shape[1]
    in_size = w_ih.shape[1]
    out_size = w_out.shape[0]

    def pack_gates(w):   # (4H, X) torch gate order [i,f,g,o] -> (X, 4Hp) order [i,f,o,g]
        X = w.shape[1]
        out = jnp.zeros((4 * Hp, X), jnp.float32)
        out = out.at[0 * Hp:0 * Hp + H].set(0.5 * w[0 * H:1 * H])   # i  (pre-scaled: sigmoid->tanh)
        out = out.at[1 * Hp:1 * Hp + H].set(0.5 * w[1 * H:2 * H])   # f
        out = out.at[2 * Hp:2 * Hp + H].set(0.5 * w[3 * H:4 * H])   # o
        out = out.at[3 * Hp:3 * Hp + H].set(w[2 * H:3 * H])         # g  (unscaled)
        return out.T

    w_ih = jnp.asarray(w_ih, jnp.float32)
    w_hh = jnp.asarray(w_hh, jnp.float32)
    b = jnp.asarray(b_ih, jnp.float32) + jnp.asarray(b_hh, jnp.float32)
    w_out = jnp.asarray(w_out, jnp.float32)
    b_out = jnp.asarray(b_out, jnp.float32)

    wih_p = pack_gates(w_ih)                                        # (in_size, 4Hp)
    bias_p = pack_gates(b[:, None])                                 # (1, 4Hp)
    whh_p = jnp.zeros((Hp, 4 * Hp), jnp.float32).at[:H].set(pack_gates(w_hh))
    wout_p = jnp.zeros((out_size, 4 * Hp), jnp.float32).at[:, :H].set(w_out)
    bout_p = jnp.zeros((1, 4 * Hp), jnp.float32).at[0, :out_size].set(b_out)

    w_f32 = jnp.concatenate([wih_p, bias_p, wout_p, bout_p], axis=0)  # (in+1+out+1, 4Hp)
    whh_bf16 = whh_p.astype(jnp.bfloat16)                             # 0.5 scale is exact in bf16
    return w_f32, whh_bf16


@jax.jit
def lstm_forward(x, w_f32, whh_bf16):
    """x: (seq_len, input_size). Returns (output_size,) == predictions[-1]."""
    seq_len, in_size = x.shape
    Hp = whh_bf16.shape[0]
    out_size = w_f32.shape[0] - in_size - 2

    vmem = pl.BlockSpec(memory_space=pltpu.MemorySpace.VMEM)
    out = pl.pallas_call(
        lstm_kernel,
        out_shape=jax.ShapeDtypeStruct((1, Hp), jnp.float32),
        in_specs=[vmem, vmem, vmem],
        out_specs=vmem,
    )(jnp.asarray(x, jnp.float32), w_f32, whh_bf16)
    return out[0, :out_size]


def lstm_reference(x, w_ih, w_hh, b_ih, b_hh, w_out, b_out):
    H = w_hh.shape[1]
    b = b_ih + b_hh

    def step(carry, x_t):
        h, c = carry
        gates = x_t @ w_ih.T + h @ w_hh.T + b
        i = jax.nn.sigmoid(gates[0 * H:1 * H])
        f = jax.nn.sigmoid(gates[1 * H:2 * H])
        g = jnp.tanh(gates[2 * H:3 * H])
        o = jax.nn.sigmoid(gates[3 * H:4 * H])
        c_new = f * c + i * g
        h_new = o * jnp.tanh(c_new)
        return (h_new, c_new), h_new

    h0 = jnp.zeros((H,), jnp.float32)
    (h_last, _), _ = lax.scan(step, (h0, h0), x)
    return h_last @ w_out.T + b_out


if __name__ == "__main__":
    # NOTE: the PyTorch module keeps hidden_cell in float64; we run in f32/bf16 (TPU-native).
    input_size, hidden, output_size = 1, 40, 1
    seq_len = 8

    key = jax.random.PRNGKey(0)
    k = jax.random.split(key, 7)
    bound = 1.0 / jnp.sqrt(hidden)

    w_ih = jax.random.uniform(k[0], (4 * hidden, input_size), jnp.float32, -bound, bound)
    w_hh = jax.random.uniform(k[1], (4 * hidden, hidden), jnp.float32, -bound, bound)
    b_ih = jax.random.uniform(k[2], (4 * hidden,), jnp.float32, -bound, bound)
    b_hh = jax.random.uniform(k[3], (4 * hidden,), jnp.float32, -bound, bound)
    w_out = jax.random.uniform(k[4], (output_size, hidden), jnp.float32, -bound, bound)
    b_out = jax.random.uniform(k[5], (output_size,), jnp.float32, -bound, bound)

    # input_seq in the PyTorch module is (seq_len,) -> viewed as (seq_len, 1, input_size)
    x = jax.random.normal(k[6], (seq_len, input_size), jnp.float32)

    # one-time packing (outside the jitted per-call path)
    w_f32, whh_bf16 = pack_params(w_ih, w_hh, b_ih, b_hh, w_out, b_out)

    y = lstm_forward(x, w_f32, whh_bf16)
    y = jax.block_until_ready(y)

    y_ref = lstm_reference(x, w_ih, w_hh, b_ih, b_hh, w_out, b_out)
    assert y.shape == (output_size,)
    # tolerance relaxed per review: recurrent matmul operands are bf16 (f32 accumulation)
    assert jnp.allclose(y, y_ref, atol=2e-2, rtol=2e-2), (y, y_ref)

    print("KERNEL_OK")
</pallas_src>

<mosaic_0001>
module attributes {stable_mosaic.version = 11 : i64} {
  func.func @lstm_kernel(%arg0: memref<8x1xf32, #tpu.memory_space<vmem>>, %arg1: memref<4x512xf32, #tpu.memory_space<vmem>>, %arg2: memref<128x512xbf16, #tpu.memory_space<vmem>>, %arg3: memref<1x128xf32, #tpu.memory_space<vmem>>) attributes {dimension_semantics = [], scalar_prefetch = 0 : i64, scratch_operands = 0 : i64, tpu.core_type = #tpu.core_type<tc>} {
    %c1 = arith.constant 1 : index
    %c0 = arith.constant 0 : index
    %0 = vector.load %arg1[%c1, %c0] : memref<4x512xf32, #tpu.memory_space<vmem>>, vector<1x512xf32>
    %1 = vector.shape_cast %0 : vector<1x512xf32> to vector<1x512xf32>
    %2 = vector.broadcast %1 : vector<1x512xf32> to vector<8x512xf32>
    %c0_0 = arith.constant 0 : index
    %c0_1 = arith.constant 0 : index
    %3 = vector.load %arg0[%c0_0, %c0_1] : memref<8x1xf32, #tpu.memory_space<vmem>>, vector<8x1xf32>
    %c0_2 = arith.constant 0 : index
    %c0_3 = arith.constant 0 : index
    %4 = vector.load %arg1[%c0_2, %c0_3] : memref<4x512xf32, #tpu.memory_space<vmem>>, vector<1x512xf32>
    %5 = vector.broadcast %3 : vector<8x1xf32> to vector<8x512xf32>
    %6 = vector.broadcast %4 : vector<1x512xf32> to vector<8x512xf32>
    %7 = arith.mulf %5, %6 : vector<8x512xf32>
    %8 = arith.addf %2, %7 : vector<8x512xf32>
    %c0_4 = arith.constant 0 : index
    %c0_5 = arith.constant 0 : index
    %9 = vector.load %arg2[%c0_4, %c0_5] : memref<128x512xbf16, #tpu.memory_space<vmem>>, vector<128x512xbf16>
    %cst = arith.constant 0.000000e+00 : f32
    %10 = vector.broadcast %cst : f32 to vector<1x128xf32>
    %11 = vector.extract_strided_slice %8 {offsets = [0, 0], sizes = [1, 512], strides = [1, 1]} : vector<8x512xf32> to vector<1x512xf32>
    %12 = math.tanh %11 : vector<1x512xf32>
    %13 = vector.extract_strided_slice %12 {offsets = [0, 0], sizes = [1, 128], strides = [1, 1]} : vector<1x512xf32> to vector<1x128xf32>
    %cst_6 = arith.constant 5.000000e-01 : f32
    %14 = vector.broadcast %cst_6 : f32 to vector<1x128xf32>
    %15 = arith.mulf %14, %13 : vector<1x128xf32>
    %cst_7 = arith.constant 5.000000e-01 : f32
    %16 = vector.broadcast %cst_7 : f32 to vector<1x128xf32>
    %17 = arith.addf %15, %16 : vector<1x128xf32>
    %18 = vector.extract_strided_slice %12 {offsets = [0, 128], sizes = [1, 128], strides = [1, 1]} : vector<1x512xf32> to vector<1x128xf32>
    %cst_8 = arith.constant 5.000000e-01 : f32
    %19 = vector.broadcast %cst_8 : f32 to vector<1x128xf32>
    %20 = arith.mulf %19, %18 : vector<1x128xf32>
    %cst_9 = arith.constant 5.000000e-01 : f32
    %21 = vector.broadcast %cst_9 : f32 to vector<1x128xf32>
    %22 = arith.addf %20, %21 : vector<1x128xf32>
    %23 = vector.extract_strided_slice %12 {offsets = [0, 256], sizes = [1, 128], strides = [1, 1]} : vector<1x512xf32> to vector<1x128xf32>
    %cst_10 = arith.constant 5.000000e-01 : f32
    %24 = vector.broadcast %cst_10 : f32 to vector<1x128xf32>
    %25 = arith.mulf %24, %23 : vector<1x128xf32>
    %cst_11 = arith.constant 5.000000e-01 : f32
    %26 = vector.broadcast %cst_11 : f32 to vector<1x128xf32>
    %27 = arith.addf %25, %26 : vector<1x128xf32>
    %28 = vector.extract_strided_slice %12 {offsets = [0, 384], sizes = [1, 128], strides = [1, 1]} : vector<1x512xf32> to vector<1x128xf32>
    %29 = arith.mulf %22, %10 : vector<1x128xf32>
    %30 = arith.mulf %17, %28 : vector<1x128xf32>
    %31 = arith.addf %29, %30 : vector<1x128xf32>
    %32 = math.tanh %31 : vector<1x128xf32>
    %33 = arith.mulf %27, %32 : vector<1x128xf32>
    %34 = arith.truncf %33 : vector<1x128xf32> to vector<1x128xbf16>
    %cst_12 = arith.constant dense<0.000000e+00> : vector<1x512xf32>
    %35 = tpu.matmul %34, %9, %cst_12 {dimension_numbers = #tpu.dot_dimension_numbers<[1], [0], [0], [1], [0, 0, 1, 1], [], []>} : vector<1x128xbf16>, vector<128x512xbf16>, vector<1x512xf32> -> vector<1x512xf32>
    %36 = vector.extract_strided_slice %8 {offsets = [1, 0], sizes = [1, 512], strides = [1, 1]} : vector<8x512xf32> to vector<1x512xf32>
    %37 = arith.addf %35, %36 : vector<1x512xf32>
    %38 = math.tanh %37 : vector<1x512xf32>
    %39 = vector.extract_strided_slice %38 {offsets = [0, 0], sizes = [1, 128], strides = [1, 1]} : vector<1x512xf32> to vector<1x128xf32>
    %cst_13 = arith.constant 5.000000e-01 : f32
    %40 = vector.broadcast %cst_13 : f32 to vector<1x128xf32>
    %41 = arith.mulf %40, %39 : vector<1x128xf32>
    %cst_14 = arith.constant 5.000000e-01 : f32
    %42 = vector.broadcast %cst_14 : f32 to vector<1x128xf32>
    %43 = arith.addf %41, %42 : vector<1x128xf32>
    %44 = vector.extract_strided_slice %38 {offsets = [0, 128], sizes = [1, 128], strides = [1, 1]} : vector<1x512xf32> to vector<1x128xf32>
    %cst_15 = arith.constant 5.000000e-01 : f32
    %45 = vector.broadcast %cst_15 : f32 to vector<1x128xf32>
    %46 = arith.mulf %45, %44 : vector<1x128xf32>
    %cst_16 = arith.constant 5.000000e-01 : f32
    %47 = vector.broadcast %cst_16 : f32 to vector<1x128xf32>
    %48 = arith.addf %46, %47 : vector<1x128xf32>
    %49 = vector.extract_strided_slice %38 {offsets = [0, 256], sizes = [1, 128], strides = [1, 1]} : vector<1x512xf32> to vector<1x128xf32>
    %cst_17 = arith.constant 5.000000e-01 : f32
    %50 = vector.broadcast %cst_17 : f32 to vector<1x128xf32>
    %51 = arith.mulf %50, %49 : vector<1x128xf32>
    %cst_18 = arith.constant 5.000000e-01 : f32
    %52 = vector.broadcast %cst_18 : f32 to vector<1x128xf32>
    %53 = arith.addf %51, %52 : vector<1x128xf32>
    %54 = vector.extract_strided_slice %38 {offsets = [0, 384], sizes = [1, 128], strides = [1, 1]} : vector<1x512xf32> to vector<1x128xf32>
    %55 = arith.mulf %48, %31 : vector<1x128xf32>
    %56 = arith.mulf %43, %54 : vector<1x128xf32>
    %57 = arith.addf %55, %56 : vector<1x128xf32>
    %58 = math.tanh %57 : vector<1x128xf32>
    %59 = arith.mulf %53, %58 : vector<1x128xf32>
    %60 = arith.truncf %59 : vector<1x128xf32> to vector<1x128xbf16>
    %cst_19 = arith.constant dense<0.000000e+00> : vector<1x512xf32>
    %61 = tpu.matmul %60, %9, %cst_19 {dimension_numbers = #tpu.dot_dimension_numbers<[1], [0], [0], [1], [0, 0, 1, 1], [], []>} : vector<1x128xbf16>, vector<128x512xbf16>, vector<1x512xf32> -> vector<1x512xf32>
    %62 = vector.extract_strided_slice %8 {offsets = [2, 0], sizes = [1, 512], strides = [1, 1]} : vector<8x512xf32> to vector<1x512xf32>
    %63 = arith.addf %61, %62 : vector<1x512xf32>
    %64 = math.tanh %63 : vector<1x512xf32>
    %65 = vector.extract_strided_slice %64 {offsets = [0, 0], sizes = [1, 128], strides = [1, 1]} : vector<1x512xf32> to vector<1x128xf32>
    %cst_20 = arith.constant 5.000000e-01 : f32
    %66 = vector.broadcast %cst_20 : f32 to vector<1x128xf32>
    %67 = arith.mulf %66, %65 : vector<1x128xf32>
    %cst_21 = arith.constant 5.000000e-01 : f32
    %68 = vector.broadcast %cst_21 : f32 to vector<1x128xf32>
    %69 = arith.addf %67, %68 : vector<1x128xf32>
    %70 = vector.extract_strided_slice %64 {offsets = [0, 128], sizes = [1, 128], strides = [1, 1]} : vector<1x512xf32> to vector<1x128xf32>
    %cst_22 = arith.constant 5.000000e-01 : f32
    %71 = vector.broadcast %cst_22 : f32 to vector<1x128xf32>
    %72 = arith.mulf %71, %70 : vector<1x128xf32>
    %cst_23 = arith.constant 5.000000e-01 : f32
    %73 = vector.broadcast %cst_23 : f32 to vector<1x128xf32>
    %74 = arith.addf %72, %73 : vector<1x128xf32>
    %75 = vector.extract_strided_slice %64 {offsets = [0, 256], sizes = [1, 128], strides = [1, 1]} : vector<1x512xf32> to vector<1x128xf32>
    %cst_24 = arith.constant 5.000000e-01 : f32
    %76 = vector.broadcast %cst_24 : f32 to vector<1x128xf32>
    %77 = arith.mulf %76, %75 : vector<1x128xf32>
    %cst_25 = arith.constant 5.000000e-01 : f32
    %78 = vector.broadcast %cst_25 : f32 to vector<1x128xf32>
    %79 = arith.addf %77, %78 : vector<1x128xf32>
    %80 = vector.extract_strided_slice %64 {offsets = [0, 384], sizes = [1, 128], strides = [1, 1]} : vector<1x512xf32> to vector<1x128xf32>
    %81 = arith.mulf %74, %57 : vector<1x128xf32>
    %82 = arith.mulf %69, %80 : vector<1x128xf32>
    %83 = arith.addf %81, %82 : vector<1x128xf32>
    %84 = math.tanh %83 : vector<1x128xf32>
    %85 = arith.mulf %79, %84 : vector<1x128xf32>
    %86 = arith.truncf %85 : vector<1x128xf32> to vector<1x128xbf16>
    %cst_26 = arith.constant dense<0.000000e+00> : vector<1x512xf32>
    %87 = tpu.matmul %86, %9, %cst_26 {dimension_numbers = #tpu.dot_dimension_numbers<[1], [0], [0], [1], [0, 0, 1, 1], [], []>} : vector<1x128xbf16>, vector<128x512xbf16>, vector<1x512xf32> -> vector<1x512xf32>
    %88 = vector.extract_strided_slice %8 {offsets = [3, 0], sizes = [1, 512], strides = [1, 1]} : vector<8x512xf32> to vector<1x512xf32>
    %89 = arith.addf %87, %88 : vector<1x512xf32>
    %90 = math.tanh %89 : vector<1x512xf32>
    %91 = vector.extract_strided_slice %90 {offsets = [0, 0], sizes = [1, 128], strides = [1, 1]} : vector<1x512xf32> to vector<1x128xf32>
    %cst_27 = arith.constant 5.000000e-01 : f32
    %92 = vector.broadcast %cst_27 : f32 to vector<1x128xf32>
    %93 = arith.mulf %92, %91 : vector<1x128xf32>
    %cst_28 = arith.constant 5.000000e-01 : f32
    %94 = vector.broadcast %cst_28 : f32 to vector<1x128xf32>
    %95 = arith.addf %93, %94 : vector<1x128xf32>
    %96 = vector.extract_strided_slice %90 {offsets = [0, 128], sizes = [1, 128], strides = [1, 1]} : vector<1x512xf32> to vector<1x128xf32>
    %cst_29 = arith.constant 5.000000e-01 : f32
    %97 = vector.broadcast %cst_29 : f32 to vector<1x128xf32>
    %98 = arith.mulf %97, %96 : vector<1x128xf32>
    %cst_30 = arith.constant 5.000000e-01 : f32
    %99 = vector.broadcast %cst_30 : f32 to vector<1x128xf32>
    %100 = arith.addf %98, %99 : vector<1x128xf32>
    %101 = vector.extract_strided_slice %90 {offsets = [0, 256], sizes = [1, 128], strides = [1, 1]} : vector<1x512xf32> to vector<1x128xf32>
    %cst_31 = arith.constant 5.000000e-01 : f32
    %102 = vector.broadcast %cst_31 : f32 to vector<1x128xf32>
    %103 = arith.mulf %102, %101 : vector<1x128xf32>
    %cst_32 = arith.constant 5.000000e-01 : f32
    %104 = vector.broadcast %cst_32 : f32 to vector<1x128xf32>
    %105 = arith.addf %103, %104 : vector<1x128xf32>
    %106 = vector.extract_strided_slice %90 {offsets = [0, 384], sizes = [1, 128], strides = [1, 1]} : vector<1x512xf32> to vector<1x128xf32>
    %107 = arith.mulf %100, %83 : vector<1x128xf32>
    %108 = arith.mulf %95, %106 : vector<1x128xf32>
    %109 = arith.addf %107, %108 : vector<1x128xf32>
    %110 = math.tanh %109 : vector<1x128xf32>
    %111 = arith.mulf %105, %110 : vector<1x128xf32>
    %112 = arith.truncf %111 : vector<1x128xf32> to vector<1x128xbf16>
    %cst_33 = arith.constant dense<0.000000e+00> : vector<1x512xf32>
    %113 = tpu.matmul %112, %9, %cst_33 {dimension_numbers = #tpu.dot_dimension_numbers<[1], [0], [0], [1], [0, 0, 1, 1], [], []>} : vector<1x128xbf16>, vector<128x512xbf16>, vector<1x512xf32> -> vector<1x512xf32>
    %114 = vector.extract_strided_slice %8 {offsets = [4, 0], sizes = [1, 512], strides = [1, 1]} : vector<8x512xf32> to vector<1x512xf32>
    %115 = arith.addf %113, %114 : vector<1x512xf32>
    %116 = math.tanh %115 : vector<1x512xf32>
    %117 = vector.extract_strided_slice %116 {offsets = [0, 0], sizes = [1, 128], strides = [1, 1]} : vector<1x512xf32> to vector<1x128xf32>
    %cst_34 = arith.constant 5.000000e-01 : f32
    %118 = vector.broadcast %cst_34 : f32 to vector<1x128xf32>
    %119 = arith.mulf %118, %117 : vector<1x128xf32>
    %cst_35 = arith.constant 5.000000e-01 : f32
    %120 = vector.broadcast %cst_35 : f32 to vector<1x128xf32>
    %121 = arith.addf %119, %120 : vector<1x128xf32>
    %122 = vector.extract_strided_slice %116 {offsets = [0, 128], sizes = [1, 128], strides = [1, 1]} : vector<1x512xf32> to vector<1x128xf32>
    %cst_36 = arith.constant 5.000000e-01 : f32
    %123 = vector.broadcast %cst_36 : f32 to vector<1x128xf32>
    %124 = arith.mulf %123, %122 : vector<1x128xf32>
    %cst_37 = arith.constant 5.000000e-01 : f32
    %125 = vector.broadcast %cst_37 : f32 to vector<1x128xf32>
    %126 = arith.addf %124, %125 : vector<1x128xf32>
    %127 = vector.extract_strided_slice %116 {offsets = [0, 256], sizes = [1, 128], strides = [1, 1]} : vector<1x512xf32> to vector<1x128xf32>
    %cst_38 = arith.constant 5.000000e-01 : f32
    %128 = vector.broadcast %cst_38 : f32 to vector<1x128xf32>
    %129 = arith.mulf %128, %127 : vector<1x128xf32>
    %cst_39 = arith.constant 5.000000e-01 : f32
    %130 = vector.broadcast %cst_39 : f32 to vector<1x128xf32>
    %131 = arith.addf %129, %130 : vector<1x128xf32>
    %132 = vector.extract_strided_slice %116 {offsets = [0, 384], sizes = [1, 128], strides = [1, 1]} : vector<1x512xf32> to vector<1x128xf32>
    %133 = arith.mulf %126, %109 : vector<1x128xf32>
    %134 = arith.mulf %121, %132 : vector<1x128xf32>
    %135 = arith.addf %133, %134 : vector<1x128xf32>
    %136 = math.tanh %135 : vector<1x128xf32>
    %137 = arith.mulf %131, %136 : vector<1x128xf32>
    %138 = arith.truncf %137 : vector<1x128xf32> to vector<1x128xbf16>
    %cst_40 = arith.constant dense<0.000000e+00> : vector<1x512xf32>
    %139 = tpu.matmul %138, %9, %cst_40 {dimension_numbers = #tpu.dot_dimension_numbers<[1], [0], [0], [1], [0, 0, 1, 1], [], []>} : vector<1x128xbf16>, vector<128x512xbf16>, vector<1x512xf32> -> vector<1x512xf32>
    %140 = vector.extract_strided_slice %8 {offsets = [5, 0], sizes = [1, 512], strides = [1, 1]} : vector<8x512xf32> to vector<1x512xf32>
    %141 = arith.addf %139, %140 : vector<1x512xf32>
    %142 = math.tanh %141 : vector<1x512xf32>
    %143 = vector.extract_strided_slice %142 {offsets = [0, 0], sizes = [1, 128], strides = [1, 1]} : vector<1x512xf32> to vector<1x128xf32>
    %cst_41 = arith.constant 5.000000e-01 : f32
    %144 = vector.broadcast %cst_41 : f32 to vector<1x128xf32>
    %145 = arith.mulf %144, %143 : vector<1x128xf32>
    %cst_42 = arith.constant 5.000000e-01 : f32
    %146 = vector.broadcast %cst_42 : f32 to vector<1x128xf32>
    %147 = arith.addf %145, %146 : vector<1x128xf32>
    %148 = vector.extract_strided_slice %142 {offsets = [0, 128], sizes = [1, 128], strides = [1, 1]} : vector<1x512xf32> to vector<1x128xf32>
    %cst_43 = arith.constant 5.000000e-01 : f32
    %149 = vector.broadcast %cst_43 : f32 to vector<1x128xf32>
    %150 = arith.mulf %149, %148 : vector<1x128xf32>
    %cst_44 = arith.constant 5.000000e-01 : f32
    %151 = vector.broadcast %cst_44 : f32 to vector<1x128xf32>
    %152 = arith.addf %150, %151 : vector<1x128xf32>
    %153 = vector.extract_strided_slice %142 {offsets = [0, 256], sizes = [1, 128], strides = [1, 1]} : vector<1x512xf32> to vector<1x128xf32>
    %cst_45 = arith.constant 5.000000e-01 : f32
    %154 = vector.broadcast %cst_45 : f32 to vector<1x128xf32>
    %155 = arith.mulf %154, %153 : vector<1x128xf32>
    %cst_46 = arith.constant 5.000000e-01 : f32
    %156 = vector.broadcast %cst_46 : f32 to vector<1x128xf32>
    %157 = arith.addf %155, %156 : vector<1x128xf32>
    %158 = vector.extract_strided_slice %142 {offsets = [0, 384], sizes = [1, 128], strides = [1, 1]} : vector<1x512xf32> to vector<1x128xf32>
    %159 = arith.mulf %152, %135 : vector<1x128xf32>
    %160 = arith.mulf %147, %158 : vector<1x128xf32>
    %161 = arith.addf %159, %160 : vector<1x128xf32>
    %162 = math.tanh %161 : vector<1x128xf32>
    %163 = arith.mulf %157, %162 : vector<1x128xf32>
    %164 = arith.truncf %163 : vector<1x128xf32> to vector<1x128xbf16>
    %cst_47 = arith.constant dense<0.000000e+00> : vector<1x512xf32>
    %165 = tpu.matmul %164, %9, %cst_47 {dimension_numbers = #tpu.dot_dimension_numbers<[1], [0], [0], [1], [0, 0, 1, 1], [], []>} : vector<1x128xbf16>, vector<128x512xbf16>, vector<1x512xf32> -> vector<1x512xf32>
    %166 = vector.extract_strided_slice %8 {offsets = [6, 0], sizes = [1, 512], strides = [1, 1]} : vector<8x512xf32> to vector<1x512xf32>
    %167 = arith.addf %165, %166 : vector<1x512xf32>
    %168 = math.tanh %167 : vector<1x512xf32>
    %169 = vector.extract_strided_slice %168 {offsets = [0, 0], sizes = [1, 128], strides = [1, 1]} : vector<1x512xf32> to vector<1x128xf32>
    %cst_48 = arith.constant 5.000000e-01 : f32
    %170 = vector.broadcast %cst_48 : f32 to vector<1x128xf32>
    %171 = arith.mulf %170, %169 : vector<1x128xf32>
    %cst_49 = arith.constant 5.000000e-01 : f32
    %172 = vector.broadcast %cst_49 : f32 to vector<1x128xf32>
    %173 = arith.addf %171, %172 : vector<1x128xf32>
    %174 = vector.extract_strided_slice %168 {offsets = [0, 128], sizes = [1, 128], strides = [1, 1]} : vector<1x512xf32> to vector<1x128xf32>
    %cst_50 = arith.constant 5.000000e-01 : f32
    %175 = vector.broadcast %cst_50 : f32 to vector<1x128xf32>
    %176 = arith.mulf %175, %174 : vector<1x128xf32>
    %cst_51 = arith.constant 5.000000e-01 : f32
    %177 = vector.broadcast %cst_51 : f32 to vector<1x128xf32>
    %178 = arith.addf %176, %177 : vector<1x128xf32>
    %179 = vector.extract_strided_slice %168 {offsets = [0, 256], sizes = [1, 128], strides = [1, 1]} : vector<1x512xf32> to vector<1x128xf32>
    %cst_52 = arith.constant 5.000000e-01 : f32
    %180 = vector.broadcast %cst_52 : f32 to vector<1x128xf32>
    %181 = arith.mulf %180, %179 : vector<1x128xf32>
    %cst_53 = arith.constant 5.000000e-01 : f32
    %182 = vector.broadcast %cst_53 : f32 to vector<1x128xf32>
    %183 = arith.addf %181, %182 : vector<1x128xf32>
    %184 = vector.extract_strided_slice %168 {offsets = [0, 384], sizes = [1, 128], strides = [1, 1]} : vector<1x512xf32> to vector<1x128xf32>
    %185 = arith.mulf %178, %161 : vector<1x128xf32>
    %186 = arith.mulf %173, %184 : vector<1x128xf32>
    %187 = arith.addf %185, %186 : vector<1x128xf32>
    %188 = math.tanh %187 : vector<1x128xf32>
    %189 = arith.mulf %183, %188 : vector<1x128xf32>
    %190 = arith.truncf %189 : vector<1x128xf32> to vector<1x128xbf16>
    %cst_54 = arith.constant dense<0.000000e+00> : vector<1x512xf32>
    %191 = tpu.matmul %190, %9, %cst_54 {dimension_numbers = #tpu.dot_dimension_numbers<[1], [0], [0], [1], [0, 0, 1, 1], [], []>} : vector<1x128xbf16>, vector<128x512xbf16>, vector<1x512xf32> -> vector<1x512xf32>
    %192 = vector.extract_strided_slice %8 {offsets = [7, 0], sizes = [1, 512], strides = [1, 1]} : vector<8x512xf32> to vector<1x512xf32>
    %193 = arith.addf %191, %192 : vector<1x512xf32>
    %194 = math.tanh %193 : vector<1x512xf32>
    %195 = vector.extract_strided_slice %194 {offsets = [0, 0], sizes = [1, 128], strides = [1, 1]} : vector<1x512xf32> to vector<1x128xf32>
    %cst_55 = arith.constant 5.000000e-01 : f32
    %196 = vector.broadcast %cst_55 : f32 to vector<1x128xf32>
    %197 = arith.mulf %196, %195 : vector<1x128xf32>
    %cst_56 = arith.constant 5.000000e-01 : f32
    %198 = vector.broadcast %cst_56 : f32 to vector<1x128xf32>
    %199 = arith.addf %197, %198 : vector<1x128xf32>
    %200 = vector.extract_strided_slice %194 {offsets = [0, 128], sizes = [1, 128], strides = [1, 1]} : vector<1x512xf32> to vector<1x128xf32>
    %cst_57 = arith.constant 5.000000e-01 : f32
    %201 = vector.broadcast %cst_57 : f32 to vector<1x128xf32>
    %202 = arith.mulf %201, %200 : vector<1x128xf32>
    %cst_58 = arith.constant 5.000000e-01 : f32
    %203 = vector.broadcast %cst_58 : f32 to vector<1x128xf32>
    %204 = arith.addf %202, %203 : vector<1x128xf32>
    %205 = vector.extract_strided_slice %194 {offsets = [0, 256], sizes = [1, 128], strides = [1, 1]} : vector<1x512xf32> to vector<1x128xf32>
    %cst_59 = arith.constant 5.000000e-01 : f32
    %206 = vector.broadcast %cst_59 : f32 to vector<1x128xf32>
    %207 = arith.mulf %206, %205 : vector<1x128xf32>
    %cst_60 = arith.constant 5.000000e-01 : f32
    %208 = vector.broadcast %cst_60 : f32 to vector<1x128xf32>
    %209 = arith.addf %207, %208 : vector<1x128xf32>
    %210 = vector.extract_strided_slice %194 {offsets = [0, 384], sizes = [1, 128], strides = [1, 1]} : vector<1x512xf32> to vector<1x128xf32>
    %211 = arith.mulf %204, %187 : vector<1x128xf32>
    %212 = arith.mulf %199, %210 : vector<1x128xf32>
    %213 = arith.addf %211, %212 : vector<1x128xf32>
    %214 = math.tanh %213 : vector<1x128xf32>
    %215 = arith.mulf %209, %214 : vector<1x128xf32>
    %216 = tpu.iota {dimensions = array<i32: 1>} : vector<1x128xi32>
    %cst_61 = arith.constant 0.000000e+00 : f32
    %217 = vector.broadcast %cst_61 : f32 to vector<1x128xf32>
    %c2 = arith.constant 2 : index
    %c0_62 = arith.constant 0 : index
    %218 = vector.load %arg1[%c2, %c0_62] : memref<4x512xf32, #tpu.memory_space<vmem>>, vector<1x128xf32>
    %219 = arith.mulf %215, %218 : vector<1x128xf32>
    %cst_63 = arith.constant dense<0.000000e+00> : vector<1xf32>
    %220 = vector.multi_reduction <add>, %219, %cst_63 [1] : vector<1x128xf32> to vector<1xf32>
    %221 = vector.shape_cast %220 : vector<1xf32> to vector<1x1xf32>
    %c0_i32 = arith.constant 0 : i32
    %222 = vector.broadcast %c0_i32 : i32 to vector<1x128xi32>
    %223 = arith.cmpi eq, %216, %222 : vector<1x128xi32>
    %224 = vector.shape_cast %221 : vector<1x1xf32> to vector<1x1xf32>
    %225 = vector.broadcast %224 : vector<1x1xf32> to vector<1x128xf32>
    %226 = arith.select %223, %225, %217 : vector<1x128xi1>, vector<1x128xf32>
    %c3 = arith.constant 3 : index
    %c0_64 = arith.constant 0 : index
    %227 = vector.load %arg1[%c3, %c0_64] : memref<4x512xf32, #tpu.memory_space<vmem>>, vector<1x128xf32>
    %228 = arith.addf %226, %227 : vector<1x128xf32>
    %c0_65 = arith.constant 0 : index
    %c0_66 = arith.constant 0 : index
    %229 = vector.load %arg3[%c0_65, %c0_66] : memref<1x128xf32, #tpu.memory_space<vmem>>, vector<1x128xf32>
    tpu.vector_store %arg3[%c0_65, %c0_66], %228 {strides = array<i32>} : memref<1x128xf32, #tpu.memory_space<vmem>>, vector<1x128xf32>,
    return
  }
}

</mosaic_0001>

<llo_original>
// kernel: lstm_forward.1
$region0: #{lstm_forward.1}
  #allocation0 [shape = 'u32[]', space=smem, size = 0x4, offset = 0x4, fixed_abs, tag = 'smem constant byte address 0x4 - core index']
  #allocation1 [shape = 'u32[144,128]{1,0:T(1,128)}', space=vmem, size = 0x12000, scoped, tag = 'internal scratch']
  %s0 = inlined_call_operand.vmem [shape: f32[8,1], index: 0, kind: input, shape index: {}]
  %s1 = inlined_call_operand.hbm [shape: f32[4,512], index: 1, kind: input, shape index: {}]
  %s2 = inlined_call_operand.hbm [shape: bf16[128,512], index: 2, kind: input, shape index: {}]
  %s3 = inlined_call_operand.hbm [shape: f32[1,128], index: 3, kind: output, shape index: {}]
  %s4 = sld [smem:[#allocation0]]
  $region30: #{lstm_forward.1} parent=0
    _
  %s6 = ssub.s32 1, %s4
  %s7 = scalar_select 0, %s6, %s4
  $region1: #{lstm_forward.1} parent=0
    #allocation2 [shape = 'u8[8192]{0}', space=vmem, size = 0x2000, scoped, tag = 'input window, operand 1, single buffered']
    #allocation3 [shape = 's32[1]{0}', space=sflag, size = 0x4, scoped, tag = 'scoped memory for lstm_forward.1']
    #allocation4 [shape = 's32[1]{0}', space=sflag, size = 0x4, scoped, tag = 'scoped memory for lstm_forward.1']
    #allocation5 [shape = 'u8[131072]{0}', space=vmem, size = 0x20000, scoped, tag = 'input window, operand 2, single buffered']
    #allocation6 [shape = 's32[1]{0}', space=sflag, size = 0x4, scoped, tag = 'scoped memory for lstm_forward.1']
    #allocation7 [shape = 'u8[512]{0}', space=vmem, size = 0x400, scoped, tag = 'output window, operand 0, single buffered']
    %8 = vsyncpa [#allocation3], 0
    %9 = vsyncpa [#allocation6], 0
    %10 = vsyncpa [#allocation4], 0
    // Predicated region
    $region2: #{lstm_forward.1} parent=1 // pred_check
      _
    $region3: #{lstm_forward.1} parent=1 // pred_check_branch
      %12 = sbr.rel (0) target = $region5
    $region4: #{lstm_forward.1} parent=1 // pred_region
      _
    $region5: #{lstm_forward.1} parent=1 // pred_fallthru
      _
    // Predicated region
    $region6: #{lstm_forward.1} parent=1 // pred_check
      _
    $region7: #{lstm_forward.1} parent=1 // pred_check_branch
      %14 = sbr.rel (0) target = $region9
    $region8: #{lstm_forward.1} parent=1 // pred_region
      %s16 = ssub.s32 256, 256
      %17 = vsyncadd [#allocation3], %s16
      %s19 = sshll.u32 [#allocation2], 4
      %s20 = int_to_ptr.vmem [resolvable:$true] %s19
      %22 = dma.hbm_to_vmem [thread:$0]  %s1, 256, %s20, [#allocation3]
    $region9: #{lstm_forward.1} parent=1 // pred_fallthru
      _
    // Predicated region
    $region10: #{lstm_forward.1} parent=1 // pred_check
      _
    $region11: #{lstm_forward.1} parent=1 // pred_check_branch
      %24 = sbr.rel (0) target = $region13
    $region12: #{lstm_forward.1} parent=1 // pred_region
      %s26 = ssub.s32 4096, 4096
      %27 = vsyncadd [#allocation6], %s26
      %s28 = sshll.u32 [#allocation5], 4
      %s29 = int_to_ptr.vmem [resolvable:$true] %s28
      %34 = dma.hbm_to_vmem [thread:$0]  %s2, 4096, %s29, [#allocation6], 256, 256, 16
    $region13: #{lstm_forward.1} parent=1 // pred_fallthru
      _
    // Predicated region
    $region14: #{lstm_forward.1} parent=1 // pred_check
      _
    $region15: #{lstm_forward.1} parent=1 // pred_check_branch
      %36 = sbr.rel (0) target = $region17
    $region16: #{lstm_forward.1} parent=1 // pred_region
      %37 = dma.done [#allocation3], 256
    $region17: #{lstm_forward.1} parent=1 // pred_fallthru
      _
    // Predicated region
    $region18: #{lstm_forward.1} parent=1 // pred_check
      _
    $region19: #{lstm_forward.1} parent=1 // pred_check_branch
      %39 = sbr.rel (0) target = $region21
    $region20: #{lstm_forward.1} parent=1 // pred_region
      %40 = dma.done [#allocation6], 4096
    $region21: #{lstm_forward.1} parent=1 // pred_fallthru
      _
    %s42 = scalar_lea.vmem [#allocation2], 1
    %v43 = vld [vmem:[%s42] ss:$4 sm:$0xf]
    %v45 = vlaneseq
    %v46 = vshrl.u32 %v45, 7
    %v47 = vsub.s32 0, %v46
    %v48 = vrot.slane %v43, %v47
    %v49 = vlaneseq
    %v50 = vshrl.u32 %v49, 7
    %v51 = vsub.s32 1, %v50
    %v52 = vrot.slane %v43, %v51
    %v53 = vlaneseq
    %v54 = vshrl.u32 %v53, 7
    %v55 = vsub.s32 2, %v54
    %v56 = vrot.slane %v43, %v55
    %v57 = vlaneseq
    %v58 = vshrl.u32 %v57, 7
    %v59 = vsub.s32 3, %v58
    %v60 = vrot.slane %v43, %v59
    %v65 = vld [vmem:[%s0] sm:$0xff]
    %v66 = vld [vmem:[#allocation2] ss:$4 sm:$0xf]
    %68 = vset.pattern.permute.xlu0 0
    %69 = vperm.xlu0 %68, %v65
    %v70 = vpop.permute.xlu0 %69
    %v73 = vlaneseq
    %v74 = vshrl.u32 %v73, 7
    %v75 = vsub.s32 0, %v74
    %v76 = vrot.slane %v66, %v75
    %v77 = vlaneseq
    %v78 = vshrl.u32 %v77, 7
    %v79 = vsub.s32 1, %v78
    %v80 = vrot.slane %v66, %v79
    %v81 = vlaneseq
    %v82 = vshrl.u32 %v81, 7
    %v83 = vsub.s32 2, %v82
    %v84 = vrot.slane %v66, %v83
    %v85 = vlaneseq
    %v86 = vshrl.u32 %v85, 7
    %v87 = vsub.s32 3, %v86
    %v88 = vrot.slane %v66, %v87
    %v93 = vmul.f32 %v70, %v76
    %v94 = vmul.f32 %v70, %v80
    %v95 = vmul.f32 %v70, %v84
    %v96 = vmul.f32 %v70, %v88
    %v97 = vadd.f32 %v48, %v93
    %v98 = vadd.f32 %v52, %v94
    %v99 = vadd.f32 %v56, %v95
    %v100 = vadd.f32 %v60, %v96
    %v101 = vld [vmem:[#allocation5] sm:$0xff]
    %v102 = vld [vmem:[#allocation5 + $0x8] sm:$0xff]
    %v103 = vld [vmem:[#allocation5 + $0x10] sm:$0xff]
    %v104 = vld [vmem:[#allocation5 + $0x18] sm:$0xff]
    %v105 = vld [vmem:[#allocation5 + $0x20] sm:$0xff]
    %v106 = vld [vmem:[#allocation5 + $0x28] sm:$0xff]
    %v107 = vld [vmem:[#allocation5 + $0x30] sm:$0xff]
    %v108 = vld [vmem:[#allocation5 + $0x38] sm:$0xff]
    %v109 = vld [vmem:[#allocation5 + $0x40] sm:$0xff]
    %v110 = vld [vmem:[#allocation5 + $0x48] sm:$0xff]
    %v111 = vld [vmem:[#allocation5 + $0x50] sm:$0xff]
    %v112 = vld [vmem:[#allocation5 + $0x58] sm:$0xff]
    %v113 = vld [vmem:[#allocation5 + $0x60] sm:$0xff]
    %v114 = vld [vmem:[#allocation5 + $0x68] sm:$0xff]
    %v115 = vld [vmem:[#allocation5 + $0x70] sm:$0xff]
    %v116 = vld [vmem:[#allocation5 + $0x78] sm:$0xff]
    %v117 = vld [vmem:[#allocation5 + $0x80] sm:$0xff]
    %v118 = vld [vmem:[#allocation5 + $0x88] sm:$0xff]
    %v119 = vld [vmem:[#allocation5 + $0x90] sm:$0xff]
    %v120 = vld [vmem:[#allocation5 + $0x98] sm:$0xff]
    %v121 = vld [vmem:[#allocation5 + $0xa0] sm:$0xff]
    %v122 = vld [vmem:[#allocation5 + $0xa8] sm:$0xff]
    %v123 = vld [vmem:[#allocation5 + $0xb0] sm:$0xff]
    %v124 = vld [vmem:[#allocation5 + $0xb8] sm:$0xff]
    %v125 = vld [vmem:[#allocation5 + $0xc0] sm:$0xff]
    %v126 = vld [vmem:[#allocation5 + $0xc8] sm:$0xff]
    %v127 = vld [vmem:[#allocation5 + $0xd0] sm:$0xff]
    %v128 = vld [vmem:[#allocation5 + $0xd8] sm:$0xff]
    %v129 = vld [vmem:[#allocation5 + $0xe0] sm:$0xff]
    %v130 = vld [vmem:[#allocation5 + $0xe8] sm:$0xff]
    %v131 = vld [vmem:[#allocation5 + $0xf0] sm:$0xff]
    %v132 = vld [vmem:[#allocation5 + $0xf8] sm:$0xff]
    %v133 = vtanh.pop %v97
    %v134 = vtanh.pop %v98
    %v135 = vtanh.pop %v99
    %v136 = vtanh.pop %v100
    %v137 = vmul.f32 %v133, 0.5
    %v138 = vadd.f32 %v137, 0.5
    %v139 = vmul.f32 %v134, 0.5
    %v140 = vadd.f32 %v139, 0.5
    %v141 = vmul.f32 %v135, 0.5
    %v142 = vadd.f32 %v141, 0.5
    %v143 = vmul.f32 %v140, 0.0
    %v144 = vmul.f32 %v138, %v136
    %v145 = vadd.f32 %v143, %v144
    %v146 = vtanh.pop %v145
    %v147 = vmul.f32 %v142, %v146
    %v148 = vpack.c.bf16 %v147, %v147
    %v181 = vunpack.c.l.b16 %v101
    %v182 = vunpack.c.h.b16 %v101
    %v183 = vunpack.c.l.b16 %v102
    %v184 = vunpack.c.h.b16 %v102
    %v185 = vunpack.c.l.b16 %v103
    %v186 = vunpack.c.h.b16 %v103
    %v187 = vunpack.c.l.b16 %v104
    %v188 = vunpack.c.h.b16 %v104
    %v189 = vunpack.c.l.b16 %v105
    %v190 = vunpack.c.h.b16 %v105
    %v191 = vunpack.c.l.b16 %v106
    %v192 = vunpack.c.h.b16 %v106
    %v193 = vunpack.c.l.b16 %v107
    %v194 = vunpack.c.h.b16 %v107
    %v195 = vunpack.c.l.b16 %v108
    %v196 = vunpack.c.h.b16 %v108
    %v197 = vunpack.c.l.b16 %v109
    %v198 = vunpack.c.h.b16 %v109
    %v199 = vunpack.c.l.b16 %v110
    %v200 = vunpack.c.h.b16 %v110
    %v201 = vunpack.c.l.b16 %v111
    %v202 = vunpack.c.h.b16 %v111
    %v203 = vunpack.c.l.b16 %v112
    %v204 = vunpack.c.h.b16 %v112
    %v205 = vunpack.c.l.b16 %v113
    %v206 = vunpack.c.h.b16 %v113
    %v207 = vunpack.c.l.b16 %v114
    %v208 = vunpack.c.h.b16 %v114
    %v209 = vunpack.c.l.b16 %v115
    %v210 = vunpack.c.h.b16 %v115
    %v211 = vunpack.c.l.b16 %v116
    %v212 = vunpack.c.h.b16 %v116
    %v213 = vunpack.c.l.b16 %v117
    %v214 = vunpack.c.h.b16 %v117
    %v215 = vunpack.c.l.b16 %v118
    %v216 = vunpack.c.h.b16 %v118
    %v217 = vunpack.c.l.b16 %v119
    %v218 = vunpack.c.h.b16 %v119
    %v219 = vunpack.c.l.b16 %v120
    %v220 = vunpack.c.h.b16 %v120
    %v221 = vunpack.c.l.b16 %v121
    %v222 = vunpack.c.h.b16 %v121
    %v223 = vunpack.c.l.b16 %v122
    %v224 = vunpack.c.h.b16 %v122
    %v225 = vunpack.c.l.b16 %v123
    %v226 = vunpack.c.h.b16 %v123
    %v227 = vunpack.c.l.b16 %v124
    %v228 = vunpack.c.h.b16 %v124
    %v229 = vunpack.c.l.b16 %v125
    %v230 = vunpack.c.h.b16 %v125
    %v231 = vunpack.c.l.b16 %v126
    %v232 = vunpack.c.h.b16 %v126
    %v233 = vunpack.c.l.b16 %v127
    %v234 = vunpack.c.h.b16 %v127
    %v235 = vunpack.c.l.b16 %v128
    %v236 = vunpack.c.h.b16 %v128
    %v237 = vunpack.c.l.b16 %v129
    %v238 = vunpack.c.h.b16 %v129
    %v239 = vunpack.c.l.b16 %v130
    %v240 = vunpack.c.h.b16 %v130
    %v241 = vunpack.c.l.b16 %v131
    %v242 = vunpack.c.h.b16 %v131
    %v243 = vunpack.c.l.b16 %v132
    %v244 = vunpack.c.h.b16 %v132
    %v245 = vpack.c.b16 %v185, %v181
    %v246 = vpack.c.b16 %v186, %v182
    %v247 = vpack.c.b16 %v187, %v183
    %v248 = vpack.c.b16 %v188, %v184
    %v249 = vpack.c.b16 %v193, %v189
    %v250 = vpack.c.b16 %v194, %v190
    %v251 = vpack.c.b16 %v195, %v191
    %v252 = vpack.c.b16 %v196, %v192
    %v253 = vpack.c.b16 %v201, %v197
    %v254 = vpack.c.b16 %v202, %v198
    %v255 = vpack.c.b16 %v203, %v199
    %v256 = vpack.c.b16 %v204, %v200
    %v257 = vpack.c.b16 %v209, %v205
    %v258 = vpack.c.b16 %v210, %v206
    %v259 = vpack.c.b16 %v211, %v207
    %v260 = vpack.c.b16 %v212, %v208
    %v261 = vpack.c.b16 %v217, %v213
    %v262 = vpack.c.b16 %v218, %v214
    %v263 = vpack.c.b16 %v219, %v215
    %v264 = vpack.c.b16 %v220, %v216
    %v265 = vpack.c.b16 %v225, %v221
    %v266 = vpack.c.b16 %v226, %v222
    %v267 = vpack.c.b16 %v227, %v223
    %v268 = vpack.c.b16 %v228, %v224
    %v269 = vpack.c.b16 %v233, %v229
    %v270 = vpack.c.b16 %v234, %v230
    %v271 = vpack.c.b16 %v235, %v231
    %v272 = vpack.c.b16 %v236, %v232
    %v273 = vpack.c.b16 %v241, %v237
    %v274 = vpack.c.b16 %v242, %v238
    %v275 = vpack.c.b16 %v243, %v239
    %v276 = vpack.c.b16 %v244, %v240
    %v313 = vrot.slane %v97, 1
    %v314 = vrot.slane %v98, 1
    %v315 = vrot.slane %v99, 1
    %v316 = vrot.slane %v100, 1
    %321 = vmatprep.subr.bf16.mxu0 %v246
    %322 = vmatpush1.bf16.msra.mxu0 %v245
    %323 = vmatprep.subr.bf16.mxu0 %v250
    %324 = vmatpush1.bf16.msra.mxu0 %v249
    %325 = vmatprep.subr.bf16.mxu0 %v254
    %326 = vmatpush1.bf16.msra.mxu0 %v253
    %327 = vmatprep.subr.bf16.mxu0 %v258
    %328 = vmatpush1.bf16.msra.mxu0 %v257
    %329 = vmatprep.subr.bf16.mxu0 %v262
    %330 = vmatpush1.bf16.msra.mxu0 %v261
    %331 = vmatprep.subr.bf16.mxu0 %v266
    %332 = vmatpush1.bf16.msra.mxu0 %v265
    %333 = vmatprep.subr.bf16.mxu0 %v270
    %334 = vmatpush1.bf16.msra.mxu0 %v269
    %335 = vmatprep.subr.bf16.mxu0 %v274
    %336 = vmatpush1.bf16.msra.mxu0 %v273
    %337 = vmatprep.subr.bf16.mxu0 0
    %338 = vmatpush1.bf16.msra.mxu0 0
    %339 = vmatprep.subr.bf16.mxu0 0
    %340 = vmatpush1.bf16.msra.mxu0 0
    %341 = vmatprep.subr.bf16.mxu0 0
    %342 = vmatpush1.bf16.msra.mxu0 0
    %343 = vmatprep.subr.bf16.mxu0 0
    %344 = vmatpush1.bf16.msra.mxu0 0
    %345 = vmatprep.subr.bf16.mxu0 0
    %346 = vmatpush1.bf16.msra.mxu0 0
    %347 = vmatprep.subr.bf16.mxu0 0
    %348 = vmatpush1.bf16.msra.mxu0 0
    %349 = vmatprep.subr.bf16.mxu0 0
    %350 = vmatpush1.bf16.msra.mxu0 0
    %351 = vmatprep.subr.bf16.mxu0 0
    %352 = vmatpush1.bf16.msra.mxu0 0
    %353 = vmatprep.mubr.bf16.mxu0 0
    %354 = vmatmul.mubr.bf16.gmra.mrb[0].mxu0 %v148
    %v355 = vpop.f32.mrb[0].mxu0
    %v356 = vadd.f32 %v313, %v355
    %v357 = vpop.f32.mrb[0].mxu0
    %v358 = vadd.f32 %v314, %v357
    %v359 = vpop.f32.mrb[0].mxu0
    %v360 = vpop.f32.mrb[0].mxu0
    %361 = vdwg.mxu0
    %362 = vmatprep.subr.bf16.mxu0 %v248
    %363 = vmatpush1.bf16.msra.mxu0 %v247
    %364 = vmatprep.subr.bf16.mxu0 %v252
    %365 = vmatpush1.bf16.msra.mxu0 %v251
    %366 = vmatprep.subr.bf16.mxu0 %v256
    %367 = vmatpush1.bf16.msra.mxu0 %v255
    %368 = vmatprep.subr.bf16.mxu0 %v260
    %369 = vmatpush1.bf16.msra.mxu0 %v259
    %370 = vmatprep.subr.bf16.mxu0 %v264
    %371 = vmatpush1.bf16.msra.mxu0 %v263
    %372 = vmatprep.subr.bf16.mxu0 %v268
    %373 = vmatpush1.bf16.msra.mxu0 %v267
    %374 = vmatprep.subr.bf16.mxu0 %v272
    %375 = vmatpush1.bf16.msra.mxu0 %v271
    %376 = vmatprep.subr.bf16.mxu0 %v276
    %377 = vmatpush1.bf16.msra.mxu0 %v275
    %378 = vmatprep.subr.bf16.mxu0 0
    %379 = vmatpush1.bf16.msra.mxu0 0
    %380 = vmatprep.subr.bf16.mxu0 0
    %381 = vmatpush1.bf16.msra.mxu0 0
    %382 = vmatprep.subr.bf16.mxu0 0
    %383 = vmatpush1.bf16.msra.mxu0 0
    %384 = vmatprep.subr.bf16.mxu0 0
    %385 = vmatpush1.bf16.msra.mxu0 0
    %386 = vmatprep.subr.bf16.mxu0 0
    %387 = vmatpush1.bf16.msra.mxu0 0
    %388 = vmatprep.subr.bf16.mxu0 0
    %389 = vmatpush1.bf16.msra.mxu0 0
    %390 = vmatprep.subr.bf16.mxu0 0
    %391 = vmatpush1.bf16.msra.mxu0 0
    %392 = vmatprep.subr.bf16.mxu0 0
    %393 = vmatpush1.bf16.msra.mxu0 0
    %394 = vmatprep.mubr.bf16.mxu0 0
    %395 = vmatmul.mubr.bf16.gmra.mrb[0].mxu0 %v148
    %v396 = vpop.f32.mrb[0].mxu0
    %v397 = vadd.f32 %v315, %v396
    %v398 = vpop.f32.mrb[0].mxu0
    %v399 = vadd.f32 %v316, %v398
    %v400 = vpop.f32.mrb[0].mxu0
    %v401 = vpop.f32.mrb[0].mxu0
    %402 = vdwg.mxu0
    %v403 = vtanh.pop %v356
    %v404 = vtanh.pop %v358
    %v405 = vtanh.pop %v397
    %v406 = vtanh.pop %v399
    %v407 = vmul.f32 %v403, 0.5
    %v408 = vadd.f32 %v407, 0.5
    %v409 = vmul.f32 %v404, 0.5
    %v410 = vadd.f32 %v409, 0.5
    %v411 = vmul.f32 %v405, 0.5
    %v412 = vadd.f32 %v411, 0.5
    %v413 = vmul.f32 %v410, %v145
    %v414 = vmul.f32 %v408, %v406
    %v415 = vadd.f32 %v413, %v414
    %v416 = vtanh.pop %v415
    %v417 = vmul.f32 %v412, %v416
    %v418 = vpack.c.bf16 %v417, %v417
    %v419 = vrot.slane %v97, 2
    %v420 = vrot.slane %v98, 2
    %v421 = vrot.slane %v99, 2
    %v422 = vrot.slane %v100, 2
    %427 = vmatprep.subr.bf16.mxu0 %v246
    %428 = vmatpush1.bf16.msra.mxu0 %v245
    %429 = vmatprep.subr.bf16.mxu0 %v250
    %430 = vmatpush1.bf16.msra.mxu0 %v249
    %431 = vmatprep.subr.bf16.mxu0 %v254
    %432 = vmatpush1.bf16.msra.mxu0 %v253
    %433 = vmatprep.subr.bf16.mxu0 %v258
    %434 = vmatpush1.bf16.msra.mxu0 %v257
    %435 = vmatprep.subr.bf16.mxu0 %v262
    %436 = vmatpush1.bf16.msra.mxu0 %v261
    %437 = vmatprep.subr.bf16.mxu0 %v266
    %438 = vmatpush1.bf16.msra.mxu0 %v265
    %439 = vmatprep.subr.bf16.mxu0 %v270
    %440 = vmatpush1.bf16.msra.mxu0 %v269
    %441 = vmatprep.subr.bf16.mxu0 %v274
    %442 = vmatpush1.bf16.msra.mxu0 %v273
    %443 = vmatprep.subr.bf16.mxu0 0
    %444 = vmatpush1.bf16.msra.mxu0 0
    %445 = vmatprep.subr.bf16.mxu0 0
    %446 = vmatpush1.bf16.msra.mxu0 0
    %447 = vmatprep.subr.bf16.mxu0 0
    %448 = vmatpush1.bf16.msra.mxu0 0
    %449 = vmatprep.subr.bf16.mxu0 0
    %450 = vmatpush1.bf16.msra.mxu0 0
    %451 = vmatprep.subr.bf16.mxu0 0
    %452 = vmatpush1.bf16.msra.mxu0 0
    %453 = vmatprep.subr.bf16.mxu0 0
    %454 = vmatpush1.bf16.msra.mxu0 0
    %455 = vmatprep.subr.bf16.mxu0 0
    %456 = vmatpush1.bf16.msra.mxu0 0
    %457 = vmatprep.subr.bf16.mxu0 0
    %458 = vmatpush1.bf16.msra.mxu0 0
    %459 = vmatprep.mubr.bf16.mxu0 0
    %460 = vmatmul.mubr.bf16.gmra.mrb[0].mxu0 %v418
    %v461 = vpop.f32.mrb[0].mxu0
    %v462 = vadd.f32 %v419, %v461
    %v463 = vpop.f32.mrb[0].mxu0
    %v464 = vadd.f32 %v420, %v463
    %v465 = vpop.f32.mrb[0].mxu0
    %v466 = vpop.f32.mrb[0].mxu0
    %467 = vdwg.mxu0
    %468 = vmatprep.subr.bf16.mxu0 %v248
    %469 = vmatpush1.bf16.msra.mxu0 %v247
    %470 = vmatprep.subr.bf16.mxu0 %v252
    %471 = vmatpush1.bf16.msra.mxu0 %v251
    %472 = vmatprep.subr.bf16.mxu0 %v256
    %473 = vmatpush1.bf16.msra.mxu0 %v255
    %474 = vmatprep.subr.bf16.mxu0 %v260
    %475 = vmatpush1.bf16.msra.mxu0 %v259
    %476 = vmatprep.subr.bf16.mxu0 %v264
    %477 = vmatpush1.bf16.msra.mxu0 %v263
    %478 = vmatprep.subr.bf16.mxu0 %v268
    %479 = vmatpush1.bf16.msra.mxu0 %v267
    %480 = vmatprep.subr.bf16.mxu0 %v272
    %481 = vmatpush1.bf16.msra.mxu0 %v271
    %482 = vmatprep.subr.bf16.mxu0 %v276
    %483 = vmatpush1.bf16.msra.mxu0 %v275
    %484 = vmatprep.subr.bf16.mxu0 0
    %485 = vmatpush1.bf16.msra.mxu0 0
    %486 = vmatprep.subr.bf16.mxu0 0
    %487 = vmatpush1.bf16.msra.mxu0 0
    %488 = vmatprep.subr.bf16.mxu0 0
    %489 = vmatpush1.bf16.msra.mxu0 0
    %490 = vmatprep.subr.bf16.mxu0 0
    %491 = vmatpush1.bf16.msra.mxu0 0
    %492 = vmatprep.subr.bf16.mxu0 0
    %493 = vmatpush1.bf16.msra.mxu0 0
    %494 = vmatprep.subr.bf16.mxu0 0
    %495 = vmatpush1.bf16.msra.mxu0 0
    %496 = vmatprep.subr.bf16.mxu0 0
    %497 = vmatpush1.bf16.msra.mxu0 0
    %498 = vmatprep.subr.bf16.mxu0 0
    %499 = vmatpush1.bf16.msra.mxu0 0
    %500 = vmatprep.mubr.bf16.mxu0 0
    %501 = vmatmul.mubr.bf16.gmra.mrb[0].mxu0 %v418
    %v502 = vpop.f32.mrb[0].mxu0
    %v503 = vadd.f32 %v421, %v502
    %v504 = vpop.f32.mrb[0].mxu0
    %v505 = vadd.f32 %v422, %v504
    %v506 = vpop.f32.mrb[0].mxu0
    %v507 = vpop.f32.mrb[0].mxu0
    %508 = vdwg.mxu0
    %v509 = vtanh.pop %v462
    %v510 = vtanh.pop %v464
    %v511 = vtanh.pop %v503
    %v512 = vtanh.pop %v505
    %v513 = vmul.f32 %v509, 0.5
    %v514 = vadd.f32 %v513, 0.5
    %v515 = vmul.f32 %v510, 0.5
    %v516 = vadd.f32 %v515, 0.5
    %v517 = vmul.f32 %v511, 0.5
    %v518 = vadd.f32 %v517, 0.5
    %v519 = vmul.f32 %v516, %v415
    %v520 = vmul.f32 %v514, %v512
    %v521 = vadd.f32 %v519, %v520
    %v522 = vtanh.pop %v521
    %v523 = vmul.f32 %v518, %v522
    %v524 = vpack.c.bf16 %v523, %v523
    %v525 = vrot.slane %v97, 3
    %v526 = vrot.slane %v98, 3
    %v527 = vrot.slane %v99, 3
    %v528 = vrot.slane %v100, 3
    %533 = vmatprep.subr.bf16.mxu0 %v246
    %534 = vmatpush1.bf16.msra.mxu0 %v245
    %535 = vmatprep.subr.bf16.mxu0 %v250
    %536 = vmatpush1.bf16.msra.mxu0 %v249
    %537 = vmatprep.subr.bf16.mxu0 %v254
    %538 = vmatpush1.bf16.msra.mxu0 %v253
    %539 = vmatprep.subr.bf16.mxu0 %v258
    %540 = vmatpush1.bf16.msra.mxu0 %v257
    %541 = vmatprep.subr.bf16.mxu0 %v262
    %542 = vmatpush1.bf16.msra.mxu0 %v261
    %543 = vmatprep.subr.bf16.mxu0 %v266
    %544 = vmatpush1.bf16.msra.mxu0 %v265
    %545 = vmatprep.subr.bf16.mxu0 %v270
    %546 = vmatpush1.bf16.msra.mxu0 %v269
    %547 = vmatprep.subr.bf16.mxu0 %v274
    %548 = vmatpush1.bf16.msra.mxu0 %v273
    %549 = vmatprep.subr.bf16.mxu0 0
    %550 = vmatpush1.bf16.msra.mxu0 0
    %551 = vmatprep.subr.bf16.mxu0 0
    %552 = vmatpush1.bf16.msra.mxu0 0
    %553 = vmatprep.subr.bf16.mxu0 0
    %554 = vmatpush1.bf16.msra.mxu0 0
    %555 = vmatprep.subr.bf16.mxu0 0
    %556 = vmatpush1.bf16.msra.mxu0 0
    %557 = vmatprep.subr.bf16.mxu0 0
    %558 = vmatpush1.bf16.msra.mxu0 0
    %559 = vmatprep.subr.bf16.mxu0 0
    %560 = vmatpush1.bf16.msra.mxu0 0
    %561 = vmatprep.subr.bf16.mxu0 0
    %562 = vmatpush1.bf16.msra.mxu0 0
    %563 = vmatprep.subr.bf16.mxu0 0
    %564 = vmatpush1.bf16.msra.mxu0 0
    %565 = vmatprep.mubr.bf16.mxu0 0
    %566 = vmatmul.mubr.bf16.gmra.mrb[0].mxu0 %v524
    %v567 = vpop.f32.mrb[0].mxu0
    %v568 = vadd.f32 %v525, %v567
    %v569 = vpop.f32.mrb[0].mxu0
    %v570 = vadd.f32 %v526, %v569
    %v571 = vpop.f32.mrb[0].mxu0
    %v572 = vpop.f32.mrb[0].mxu0
    %573 = vdwg.mxu0
    %574 = vmatprep.subr.bf16.mxu0 %v248
    %575 = vmatpush1.bf16.msra.mxu0 %v247
    %576 = vmatprep.subr.bf16.mxu0 %v252
    %577 = vmatpush1.bf16.msra.mxu0 %v251
    %578 = vmatprep.subr.bf16.mxu0 %v256
    %579 = vmatpush1.bf16.msra.mxu0 %v255
    %580 = vmatprep.subr.bf16.mxu0 %v260
    %581 = vmatpush1.bf16.msra.mxu0 %v259
    %582 = vmatprep.subr.bf16.mxu0 %v264
    %583 = vmatpush1.bf16.msra.mxu0 %v263
    %584 = vmatprep.subr.bf16.mxu0 %v268
    %585 = vmatpush1.bf16.msra.mxu0 %v267
    %586 = vmatprep.subr.bf16.mxu0 %v272
    %587 = vmatpush1.bf16.msra.mxu0 %v271
    %588 = vmatprep.subr.bf16.mxu0 %v276
    %589 = vmatpush1.bf16.msra.mxu0 %v275
    %590 = vmatprep.subr.bf16.mxu0 0
    %591 = vmatpush1.bf16.msra.mxu0 0
    %592 = vmatprep.subr.bf16.mxu0 0
    %593 = vmatpush1.bf16.msra.mxu0 0
    %594 = vmatprep.subr.bf16.mxu0 0
    %595 = vmatpush1.bf16.msra.mxu0 0
    %596 = vmatprep.subr.bf16.mxu0 0
    %597 = vmatpush1.bf16.msra.mxu0 0
    %598 = vmatprep.subr.bf16.mxu0 0
    %599 = vmatpush1.bf16.msra.mxu0 0
    %600 = vmatprep.subr.bf16.mxu0 0
    %601 = vmatpush1.bf16.msra.mxu0 0
    %602 = vmatprep.subr.bf16.mxu0 0
    %603 = vmatpush1.bf16.msra.mxu0 0
    %604 = vmatprep.subr.bf16.mxu0 0
    %605 = vmatpush1.bf16.msra.mxu0 0
    %606 = vmatprep.mubr.bf16.mxu0 0
    %607 = vmatmul.mubr.bf16.gmra.mrb[0].mxu0 %v524
    %v608 = vpop.f32.mrb[0].mxu0
    %v609 = vadd.f32 %v527, %v608
    %v610 = vpop.f32.mrb[0].mxu0
    %v611 = vadd.f32 %v528, %v610
    %v612 = vpop.f32.mrb[0].mxu0
    %v613 = vpop.f32.mrb[0].mxu0
    %614 = vdwg.mxu0
    %v615 = vtanh.pop %v568
    %v616 = vtanh.pop %v570
    %v617 = vtanh.pop %v609
    %v618 = vtanh.pop %v611
    %v619 = vmul.f32 %v615, 0.5
    %v620 = vadd.f32 %v619, 0.5
    %v621 = vmul.f32 %v616, 0.5
    %v622 = vadd.f32 %v621, 0.5
    %v623 = vmul.f32 %v617, 0.5
    %v624 = vadd.f32 %v623, 0.5
    %v625 = vmul.f32 %v622, %v521
    %v626 = vmul.f32 %v620, %v618
    %v627 = vadd.f32 %v625, %v626
    %v628 = vtanh.pop %v627
    %v629 = vmul.f32 %v624, %v628
    %v630 = vpack.c.bf16 %v629, %v629
    %v631 = vrot.slane %v97, 4
    %v632 = vrot.slane %v98, 4
    %v633 = vrot.slane %v99, 4
    %v634 = vrot.slane %v100, 4
    %639 = vmatprep.subr.bf16.mxu0 %v246
    %640 = vmatpush1.bf16.msra.mxu0 %v245
    %641 = vmatprep.subr.bf16.mxu0 %v250
    %642 = vmatpush1.bf16.msra.mxu0 %v249
    %643 = vmatprep.subr.bf16.mxu0 %v254
    %644 = vmatpush1.bf16.msra.mxu0 %v253
    %645 = vmatprep.subr.bf16.mxu0 %v258
    %646 = vmatpush1.bf16.msra.mxu0 %v257
    %647 = vmatprep.subr.bf16.mxu0 %v262
    %648 = vmatpush1.bf16.msra.mxu0 %v261
    %649 = vmatprep.subr.bf16.mxu0 %v266
    %650 = vmatpush1.bf16.msra.mxu0 %v265
    %651 = vmatprep.subr.bf16.mxu0 %v270
    %652 = vmatpush1.bf16.msra.mxu0 %v269
    %653 = vmatprep.subr.bf16.mxu0 %v274
    %654 = vmatpush1.bf16.msra.mxu0 %v273
    %655 = vmatprep.subr.bf16.mxu0 0
    %656 = vmatpush1.bf16.msra.mxu0 0
    %657 = vmatprep.subr.bf16.mxu0 0
    %658 = vmatpush1.bf16.msra.mxu0 0
    %659 = vmatprep.subr.bf16.mxu0 0
    %660 = vmatpush1.bf16.msra.mxu0 0
    %661 = vmatprep.subr.bf16.mxu0 0
    %662 = vmatpush1.bf16.msra.mxu0 0
    %663 = vmatprep.subr.bf16.mxu0 0
    %664 = vmatpush1.bf16.msra.mxu0 0
    %665 = vmatprep.subr.bf16.mxu0 0
    %666 = vmatpush1.bf16.msra.mxu0 0
    %667 = vmatprep.subr.bf16.mxu0 0
    %668 = vmatpush1.bf16.msra.mxu0 0
    %669 = vmatprep.subr.bf16.mxu0 0
    %670 = vmatpush1.bf16.msra.mxu0 0
    %671 = vmatprep.mubr.bf16.mxu0 0
    %672 = vmatmul.mubr.bf16.gmra.mrb[0].mxu0 %v630
    %v673 = vpop.f32.mrb[0].mxu0
    %v674 = vadd.f32 %v631, %v673
    %v675 = vpop.f32.mrb[0].mxu0
    %v676 = vadd.f32 %v632, %v675
    %v677 = vpop.f32.mrb[0].mxu0
    %v678 = vpop.f32.mrb[0].mxu0
    %679 = vdwg.mxu0
    %680 = vmatprep.subr.bf16.mxu0 %v248
    %681 = vmatpush1.bf16.msra.mxu0 %v247
    %682 = vmatprep.subr.bf16.mxu0 %v252
    %683 = vmatpush1.bf16.msra.mxu0 %v251
    %684 = vmatprep.subr.bf16.mxu0 %v256
    %685 = vmatpush1.bf16.msra.mxu0 %v255
    %686 = vmatprep.subr.bf16.mxu0 %v260
    %687 = vmatpush1.bf16.msra.mxu0 %v259
    %688 = vmatprep.subr.bf16.mxu0 %v264
    %689 = vmatpush1.bf16.msra.mxu0 %v263
    %690 = vmatprep.subr.bf16.mxu0 %v268
    %691 = vmatpush1.bf16.msra.mxu0 %v267
    %692 = vmatprep.subr.bf16.mxu0 %v272
    %693 = vmatpush1.bf16.msra.mxu0 %v271
    %694 = vmatprep.subr.bf16.mxu0 %v276
    %695 = vmatpush1.bf16.msra.mxu0 %v275
    %696 = vmatprep.subr.bf16.mxu0 0
    %697 = vmatpush1.bf16.msra.mxu0 0
    %698 = vmatprep.subr.bf16.mxu0 0
    %699 = vmatpush1.bf16.msra.mxu0 0
    %700 = vmatprep.subr.bf16.mxu0 0
    %701 = vmatpush1.bf16.msra.mxu0 0
    %702 = vmatprep.subr.bf16.mxu0 0
    %703 = vmatpush1.bf16.msra.mxu0 0
    %704 = vmatprep.subr.bf16.mxu0 0
    %705 = vmatpush1.bf16.msra.mxu0 0
    %706 = vmatprep.subr.bf16.mxu0 0
    %707 = vmatpush1.bf16.msra.mxu0 0
    %708 = vmatprep.subr.bf16.mxu0 0
    %709 = vmatpush1.bf16.msra.mxu0 0
    %710 = vmatprep.subr.bf16.mxu0 0
    %711 = vmatpush1.bf16.msra.mxu0 0
    %712 = vmatprep.mubr.bf16.mxu0 0
    %713 = vmatmul.mubr.bf16.gmra.mrb[0].mxu0 %v630
    %v714 = vpop.f32.mrb[0].mxu0
    %v715 = vadd.f32 %v633, %v714
    %v716 = vpop.f32.mrb[0].mxu0
    %v717 = vadd.f32 %v634, %v716
    %v718 = vpop.f32.mrb[0].mxu0
    %v719 = vpop.f32.mrb[0].mxu0
    %720 = vdwg.mxu0
    %v721 = vtanh.pop %v674
    %v722 = vtanh.pop %v676
    %v723 = vtanh.pop %v715
    %v724 = vtanh.pop %v717
    %v725 = vmul.f32 %v721, 0.5
    %v726 = vadd.f32 %v725, 0.5
    %v727 = vmul.f32 %v722, 0.5
    %v728 = vadd.f32 %v727, 0.5
    %v729 = vmul.f32 %v723, 0.5
    %v730 = vadd.f32 %v729, 0.5
    %v731 = vmul.f32 %v728, %v627
    %v732 = vmul.f32 %v726, %v724
    %v733 = vadd.f32 %v731, %v732
    %v734 = vtanh.pop %v733
    %v735 = vmul.f32 %v730, %v734
    %v736 = vpack.c.bf16 %v735, %v735
    %v737 = vrot.slane %v97, 5
    %v738 = vrot.slane %v98, 5
    %v739 = vrot.slane %v99, 5
    %v740 = vrot.slane %v100, 5
    %745 = vmatprep.subr.bf16.mxu0 %v246
    %746 = vmatpush1.bf16.msra.mxu0 %v245
    %747 = vmatprep.subr.bf16.mxu0 %v250
    %748 = vmatpush1.bf16.msra.mxu0 %v249
    %749 = vmatprep.subr.bf16.mxu0 %v254
    %750 = vmatpush1.bf16.msra.mxu0 %v253
    %751 = vmatprep.subr.bf16.mxu0 %v258
    %752 = vmatpush1.bf16.msra.mxu0 %v257
    %753 = vmatprep.subr.bf16.mxu0 %v262
    %754 = vmatpush1.bf16.msra.mxu0 %v261
    %755 = vmatprep.subr.bf16.mxu0 %v266
    %756 = vmatpush1.bf16.msra.mxu0 %v265
    %757 = vmatprep.subr.bf16.mxu0 %v270
    %758 = vmatpush1.bf16.msra.mxu0 %v269
    %759 = vmatprep.subr.bf16.mxu0 %v274
    %760 = vmatpush1.bf16.msra.mxu0 %v273
    %761 = vmatprep.subr.bf16.mxu0 0
    %762 = vmatpush1.bf16.msra.mxu0 0
    %763 = vmatprep.subr.bf16.mxu0 0
    %764 = vmatpush1.bf16.msra.mxu0 0
    %765 = vmatprep.subr.bf16.mxu0 0
    %766 = vmatpush1.bf16.msra.mxu0 0
    %767 = vmatprep.subr.bf16.mxu0 0
    %768 = vmatpush1.bf16.msra.mxu0 0
    %769 = vmatprep.subr.bf16.mxu0 0
    %770 = vmatpush1.bf16.msra.mxu0 0
    %771 = vmatprep.subr.bf16.mxu0 0
    %772 = vmatpush1.bf16.msra.mxu0 0
    %773 = vmatprep.subr.bf16.mxu0 0
    %774 = vmatpush1.bf16.msra.mxu0 0
    %775 = vmatprep.subr.bf16.mxu0 0
    %776 = vmatpush1.bf16.msra.mxu0 0
    %777 = vmatprep.mubr.bf16.mxu0 0
    %778 = vmatmul.mubr.bf16.gmra.mrb[0].mxu0 %v736
    %v779 = vpop.f32.mrb[0].mxu0
    %v780 = vadd.f32 %v737, %v779
    %v781 = vpop.f32.mrb[0].mxu0
    %v782 = vadd.f32 %v738, %v781
    %v783 = vpop.f32.mrb[0].mxu0
    %v784 = vpop.f32.mrb[0].mxu0
    %785 = vdwg.mxu0
    %786 = vmatprep.subr.bf16.mxu0 %v248
    %787 = vmatpush1.bf16.msra.mxu0 %v247
    %788 = vmatprep.subr.bf16.mxu0 %v252
    %789 = vmatpush1.bf16.msra.mxu0 %v251
    %790 = vmatprep.subr.bf16.mxu0 %v256
    %791 = vmatpush1.bf16.msra.mxu0 %v255
    %792 = vmatprep.subr.bf16.mxu0 %v260
    %793 = vmatpush1.bf16.msra.mxu0 %v259
    %794 = vmatprep.subr.bf16.mxu0 %v264
    %795 = vmatpush1.bf16.msra.mxu0 %v263
    %796 = vmatprep.subr.bf16.mxu0 %v268
    %797 = vmatpush1.bf16.msra.mxu0 %v267
    %798 = vmatprep.subr.bf16.mxu0 %v272
    %799 = vmatpush1.bf16.msra.mxu0 %v271
    %800 = vmatprep.subr.bf16.mxu0 %v276
    %801 = vmatpush1.bf16.msra.mxu0 %v275
    %802 = vmatprep.subr.bf16.mxu0 0
    %803 = vmatpush1.bf16.msra.mxu0 0
    %804 = vmatprep.subr.bf16.mxu0 0
    %805 = vmatpush1.bf16.msra.mxu0 0
    %806 = vmatprep.subr.bf16.mxu0 0
    %807 = vmatpush1.bf16.msra.mxu0 0
    %808 = vmatprep.subr.bf16.mxu0 0
    %809 = vmatpush1.bf16.msra.mxu0 0
    %810 = vmatprep.subr.bf16.mxu0 0
    %811 = vmatpush1.bf16.msra.mxu0 0
    %812 = vmatprep.subr.bf16.mxu0 0
    %813 = vmatpush1.bf16.msra.mxu0 0
    %814 = vmatprep.subr.bf16.mxu0 0
    %815 = vmatpush1.bf16.msra.mxu0 0
    %816 = vmatprep.subr.bf16.mxu0 0
    %817 = vmatpush1.bf16.msra.mxu0 0
    %818 = vmatprep.mubr.bf16.mxu0 0
    %819 = vmatmul.mubr.bf16.gmra.mrb[0].mxu0 %v736
    %v820 = vpop.f32.mrb[0].mxu0
    %v821 = vadd.f32 %v739, %v820
    %v822 = vpop.f32.mrb[0].mxu0
    %v823 = vadd.f32 %v740, %v822
    %v824 = vpop.f32.mrb[0].mxu0
    %v825 = vpop.f32.mrb[0].mxu0
    %826 = vdwg.mxu0
    %v827 = vtanh.pop %v780
    %v828 = vtanh.pop %v782
    %v829 = vtanh.pop %v821
    %v830 = vtanh.pop %v823
    %v831 = vmul.f32 %v827, 0.5
    %v832 = vadd.f32 %v831, 0.5
    %v833 = vmul.f32 %v828, 0.5
    %v834 = vadd.f32 %v833, 0.5
    %v835 = vmul.f32 %v829, 0.5
    %v836 = vadd.f32 %v835, 0.5
    %v837 = vmul.f32 %v834, %v733
    %v838 = vmul.f32 %v832, %v830
    %v839 = vadd.f32 %v837, %v838
    %v840 = vtanh.pop %v839
    %v841 = vmul.f32 %v836, %v840
    %v842 = vpack.c.bf16 %v841, %v841
    %v843 = vrot.slane %v97, 6
    %v844 = vrot.slane %v98, 6
    %v845 = vrot.slane %v99, 6
    %v846 = vrot.slane %v100, 6
    %851 = vmatprep.subr.bf16.mxu0 %v246
    %852 = vmatpush1.bf16.msra.mxu0 %v245
    %853 = vmatprep.subr.bf16.mxu0 %v250
    %854 = vmatpush1.bf16.msra.mxu0 %v249
    %855 = vmatprep.subr.bf16.mxu0 %v254
    %856 = vmatpush1.bf16.msra.mxu0 %v253
    %857 = vmatprep.subr.bf16.mxu0 %v258
    %858 = vmatpush1.bf16.msra.mxu0 %v257
    %859 = vmatprep.subr.bf16.mxu0 %v262
    %860 = vmatpush1.bf16.msra.mxu0 %v261
    %861 = vmatprep.subr.bf16.mxu0 %v266
    %862 = vmatpush1.bf16.msra.mxu0 %v265
    %863 = vmatprep.subr.bf16.mxu0 %v270
    %864 = vmatpush1.bf16.msra.mxu0 %v269
    %865 = vmatprep.subr.bf16.mxu0 %v274
    %866 = vmatpush1.bf16.msra.mxu0 %v273
    %867 = vmatprep.subr.bf16.mxu0 0
    %868 = vmatpush1.bf16.msra.mxu0 0
    %869 = vmatprep.subr.bf16.mxu0 0
    %870 = vmatpush1.bf16.msra.mxu0 0
    %871 = vmatprep.subr.bf16.mxu0 0
    %872 = vmatpush1.bf16.msra.mxu0 0
    %873 = vmatprep.subr.bf16.mxu0 0
    %874 = vmatpush1.bf16.msra.mxu0 0
    %875 = vmatprep.subr.bf16.mxu0 0
    %876 = vmatpush1.bf16.msra.mxu0 0
    %877 = vmatprep.subr.bf16.mxu0 0
    %878 = vmatpush1.bf16.msra.mxu0 0
    %879 = vmatprep.subr.bf16.mxu0 0
    %880 = vmatpush1.bf16.msra.mxu0 0
    %881 = vmatprep.subr.bf16.mxu0 0
    %882 = vmatpush1.bf16.msra.mxu0 0
    %883 = vmatprep.mubr.bf16.mxu0 0
    %884 = vmatmul.mubr.bf16.gmra.mrb[0].mxu0 %v842
    %v885 = vpop.f32.mrb[0].mxu0
    %v886 = vadd.f32 %v843, %v885
    %v887 = vpop.f32.mrb[0].mxu0
    %v888 = vadd.f32 %v844, %v887
    %v889 = vpop.f32.mrb[0].mxu0
    %v890 = vpop.f32.mrb[0].mxu0
    %891 = vdwg.mxu0
    %892 = vmatprep.subr.bf16.mxu0 %v248
    %893 = vmatpush1.bf16.msra.mxu0 %v247
    %894 = vmatprep.subr.bf16.mxu0 %v252
    %895 = vmatpush1.bf16.msra.mxu0 %v251
    %896 = vmatprep.subr.bf16.mxu0 %v256
    %897 = vmatpush1.bf16.msra.mxu0 %v255
    %898 = vmatprep.subr.bf16.mxu0 %v260
    %899 = vmatpush1.bf16.msra.mxu0 %v259
    %900 = vmatprep.subr.bf16.mxu0 %v264
    %901 = vmatpush1.bf16.msra.mxu0 %v263
    %902 = vmatprep.subr.bf16.mxu0 %v268
    %903 = vmatpush1.bf16.msra.mxu0 %v267
    %904 = vmatprep.subr.bf16.mxu0 %v272
    %905 = vmatpush1.bf16.msra.mxu0 %v271
    %906 = vmatprep.subr.bf16.mxu0 %v276
    %907 = vmatpush1.bf16.msra.mxu0 %v275
    %908 = vmatprep.subr.bf16.mxu0 0
    %909 = vmatpush1.bf16.msra.mxu0 0
    %910 = vmatprep.subr.bf16.mxu0 0
    %911 = vmatpush1.bf16.msra.mxu0 0
    %912 = vmatprep.subr.bf16.mxu0 0
    %913 = vmatpush1.bf16.msra.mxu0 0
    %914 = vmatprep.subr.bf16.mxu0 0
    %915 = vmatpush1.bf16.msra.mxu0 0
    %916 = vmatprep.subr.bf16.mxu0 0
    %917 = vmatpush1.bf16.msra.mxu0 0
    %918 = vmatprep.subr.bf16.mxu0 0
    %919 = vmatpush1.bf16.msra.mxu0 0
    %920 = vmatprep.subr.bf16.mxu0 0
    %921 = vmatpush1.bf16.msra.mxu0 0
    %922 = vmatprep.subr.bf16.mxu0 0
    %923 = vmatpush1.bf16.msra.mxu0 0
    %924 = vmatprep.mubr.bf16.mxu0 0
    %925 = vmatmul.mubr.bf16.gmra.mrb[0].mxu0 %v842
    %v926 = vpop.f32.mrb[0].mxu0
    %v927 = vadd.f32 %v845, %v926
    %v928 = vpop.f32.mrb[0].mxu0
    %v929 = vadd.f32 %v846, %v928
    %v930 = vpop.f32.mrb[0].mxu0
    %v931 = vpop.f32.mrb[0].mxu0
    %932 = vdwg.mxu0
    %v933 = vtanh.pop %v886
    %v934 = vtanh.pop %v888
    %v935 = vtanh.pop %v927
    %v936 = vtanh.pop %v929
    %v937 = vmul.f32 %v933, 0.5
    %v938 = vadd.f32 %v937, 0.5
    %v939 = vmul.f32 %v934, 0.5
    %v940 = vadd.f32 %v939, 0.5
    %v941 = vmul.f32 %v935, 0.5
    %v942 = vadd.f32 %v941, 0.5
    %v943 = vmul.f32 %v940, %v839
    %v944 = vmul.f32 %v938, %v936
    %v945 = vadd.f32 %v943, %v944
    %v946 = vtanh.pop %v945
    %v947 = vmul.f32 %v942, %v946
    %v948 = vpack.c.bf16 %v947, %v947
    %v949 = vrot.slane %v97, 7
    %v950 = vrot.slane %v98, 7
    %v951 = vrot.slane %v99, 7
    %v952 = vrot.slane %v100, 7
    %957 = vmatprep.subr.bf16.mxu0 %v246
    %958 = vmatpush1.bf16.msra.mxu0 %v245
    %959 = vmatprep.subr.bf16.mxu0 %v250
    %960 = vmatpush1.bf16.msra.mxu0 %v249
    %961 = vmatprep.subr.bf16.mxu0 %v254
    %962 = vmatpush1.bf16.msra.mxu0 %v253
    %963 = vmatprep.subr.bf16.mxu0 %v258
    %964 = vmatpush1.bf16.msra.mxu0 %v257
    %965 = vmatprep.subr.bf16.mxu0 %v262
    %966 = vmatpush1.bf16.msra.mxu0 %v261
    %967 = vmatprep.subr.bf16.mxu0 %v266
    %968 = vmatpush1.bf16.msra.mxu0 %v265
    %969 = vmatprep.subr.bf16.mxu0 %v270
    %970 = vmatpush1.bf16.msra.mxu0 %v269
    %971 = vmatprep.subr.bf16.mxu0 %v274
    %972 = vmatpush1.bf16.msra.mxu0 %v273
    %973 = vmatprep.subr.bf16.mxu0 0
    %974 = vmatpush1.bf16.msra.mxu0 0
    %975 = vmatprep.subr.bf16.mxu0 0
    %976 = vmatpush1.bf16.msra.mxu0 0
    %977 = vmatprep.subr.bf16.mxu0 0
    %978 = vmatpush1.bf16.msra.mxu0 0
    %979 = vmatprep.subr.bf16.mxu0 0
    %980 = vmatpush1.bf16.msra.mxu0 0
    %981 = vmatprep.subr.bf16.mxu0 0
    %982 = vmatpush1.bf16.msra.mxu0 0
    %983 = vmatprep.subr.bf16.mxu0 0
    %984 = vmatpush1.bf16.msra.mxu0 0
    %985 = vmatprep.subr.bf16.mxu0 0
    %986 = vmatpush1.bf16.msra.mxu0 0
    %987 = vmatprep.subr.bf16.mxu0 0
    %988 = vmatpush1.bf16.msra.mxu0 0
    %989 = vmatprep.mubr.bf16.mxu0 0
    %990 = vmatmul.mubr.bf16.gmra.mrb[0].mxu0 %v948
    %v991 = vpop.f32.mrb[0].mxu0
    %v992 = vadd.f32 %v949, %v991
    %v993 = vpop.f32.mrb[0].mxu0
    %v994 = vadd.f32 %v950, %v993
    %v995 = vpop.f32.mrb[0].mxu0
    %v996 = vpop.f32.mrb[0].mxu0
    %997 = vdwg.mxu0
    %998 = vmatprep.subr.bf16.mxu0 %v248
    %999 = vmatpush1.bf16.msra.mxu0 %v247
    %1000 = vmatprep.subr.bf16.mxu0 %v252
    %1001 = vmatpush1.bf16.msra.mxu0 %v251
    %1002 = vmatprep.subr.bf16.mxu0 %v256
    %1003 = vmatpush1.bf16.msra.mxu0 %v255
    %1004 = vmatprep.subr.bf16.mxu0 %v260
    %1005 = vmatpush1.bf16.msra.mxu0 %v259
    %1006 = vmatprep.subr.bf16.mxu0 %v264
    %1007 = vmatpush1.bf16.msra.mxu0 %v263
    %1008 = vmatprep.subr.bf16.mxu0 %v268
    %1009 = vmatpush1.bf16.msra.mxu0 %v267
    %1010 = vmatprep.subr.bf16.mxu0 %v272
    %1011 = vmatpush1.bf16.msra.mxu0 %v271
    %1012 = vmatprep.subr.bf16.mxu0 %v276
    %1013 = vmatpush1.bf16.msra.mxu0 %v275
    %1014 = vmatprep.subr.bf16.mxu0 0
    %1015 = vmatpush1.bf16.msra.mxu0 0
    %1016 = vmatprep.subr.bf16.mxu0 0
    %1017 = vmatpush1.bf16.msra.mxu0 0
    %1018 = vmatprep.subr.bf16.mxu0 0
    %1019 = vmatpush1.bf16.msra.mxu0 0
    %1020 = vmatprep.subr.bf16.mxu0 0
    %1021 = vmatpush1.bf16.msra.mxu0 0
    %1022 = vmatprep.subr.bf16.mxu0 0
    %1023 = vmatpush1.bf16.msra.mxu0 0
    %1024 = vmatprep.subr.bf16.mxu0 0
    %1025 = vmatpush1.bf16.msra.mxu0 0
    %1026 = vmatprep.subr.bf16.mxu0 0
    %1027 = vmatpush1.bf16.msra.mxu0 0
    %1028 = vmatprep.subr.bf16.mxu0 0
    %1029 = vmatpush1.bf16.msra.mxu0 0
    %1030 = vmatprep.mubr.bf16.mxu0 0
    %1031 = vmatmul.mubr.bf16.gmra.mrb[0].mxu0 %v948
    %v1032 = vpop.f32.mrb[0].mxu0
    %v1033 = vadd.f32 %v951, %v1032
    %v1034 = vpop.f32.mrb[0].mxu0
    %v1035 = vadd.f32 %v952, %v1034
    %v1036 = vpop.f32.mrb[0].mxu0
    %v1037 = vpop.f32.mrb[0].mxu0
    %1038 = vdwg.mxu0
    %v1039 = vtanh.pop %v992
    %v1040 = vtanh.pop %v994
    %v1041 = vtanh.pop %v1033
    %v1042 = vtanh.pop %v1035
    %v1043 = vmul.f32 %v1039, 0.5
    %v1044 = vadd.f32 %v1043, 0.5
    %v1045 = vmul.f32 %v1040, 0.5
    %v1046 = vadd.f32 %v1045, 0.5
    %v1047 = vmul.f32 %v1041, 0.5
    %v1048 = vadd.f32 %v1047, 0.5
    %v1049 = vmul.f32 %v1046, %v945
    %v1050 = vmul.f32 %v1044, %v1042
    %v1051 = vadd.f32 %v1049, %v1050
    %v1052 = vtanh.pop %v1051
    %v1053 = vmul.f32 %v1048, %v1052
    %v1054 = vlaneseq
    %v1055 = vand.u32 %v1054, 127
    %v1056 = vld [vmem:[#allocation2 + $0x2] sm:$0x1]
    %v1057 = vmul.f32 %v1053, %v1056
    %vm1058 = vcmask 1040384
    %v1059 = vsel %vm1058, %v1057, 0.0
    %1060 = vadd.xlane.f32.xlu0 %v1059
    %v1061 = vpop.xlane.xlu0 %1060
    %vm1062 = vcmp.eq.s32.totalorder %v1055, 0
    %v1063 = vsel %vm1062, %v1061, 0.0
    %v1064 = vld [vmem:[#allocation2 + $0x3] sm:$0x1]
    %v1065 = vadd.f32 %v1063, %v1064
    %1066 = vst [vmem:[#allocation7] sm:$0x1] %v1065
    // Predicated region
    $region22: #{lstm_forward.1} parent=1 // pred_check
      _
    $region23: #{lstm_forward.1} parent=1 // pred_check_branch
      %1068 = sbr.rel (0) target = $region25
    $region24: #{lstm_forward.1} parent=1 // pred_region
      %s1070 = ssub.s32 16, 16
      %1071 = vsyncadd [#allocation4], %s1070
      %s1073 = sshll.u32 [#allocation7], 4
      %s1074 = int_to_ptr.vmem [resolvable:$true] %s1073
      %1076 = dma.vmem_to_hbm [thread:$0]  %s1074, 16, %s3, [#allocation4]
    $region25: #{lstm_forward.1} parent=1 // pred_fallthru
      _
    // Predicated region
    $region26: #{lstm_forward.1} parent=1 // pred_check
      _
    $region27: #{lstm_forward.1} parent=1 // pred_check_branch
      %1078 = sbr.rel (0) target = $region29
    $region28: #{lstm_forward.1} parent=1 // pred_region
      %1079 = dma.done [#allocation4], 16
    $region29: #{lstm_forward.1} parent=1 // pred_fallthru
      _
    %1080 = vsyncpa [#allocation3], 1
    %1081 = vsyncpa [#allocation6], 1
    %1082 = vsyncpa [#allocation4], 1

</llo_original>
